<compile_context>
chip_gen: v5e
topology: v5e:2x2
jax: 0.10.0
libtpu: 0.0.40
codegen_flags: <defaults>
</compile_context>

<pallas_src>
import functools

import jax
import jax.numpy as jnp
from jax import lax
from jax.experimental import pallas as pl
from jax.experimental.pallas import tpu as pltpu


# ----------------------------- fused kernel -------------------------------- #

def _stem_kernel(x_ref, w_ref, b_ref, o_ref, *, OH, OW, PH, PW):
    """Fused Conv(7x7,s2,p3) + BN(folded) + ReLU + MaxPool(3x3,s2,p1) for one image.

    x_ref: (1, Hs, Ws, 12)   space-to-depth padded input, bf16 (Hs = OH+3, Ws = OW+3,
                             channel index = (dh*2 + dw)*Cin + ci)
    w_ref: (192, 64)         conv weights, K ordered (kh2, kw2, dh, dw, ci), BN scale
                             folded, bf16
    b_ref: (1, PW*64)        BN bias (beta - mean*scale) tiled per pooled column, f32
    o_ref: (1, PH, PW*64)    pooled output, lane-dense, f32
    """
    cout = o_ref.shape[-1] // PW                     # 64
    f32 = jnp.float32
    neg = jnp.finfo(f32).min                         # "-inf" pad for the pre-ReLU pool

    # --- build the (OH*OW, 192) patch slab: 7x7/s2 conv == 4x4/s1 conv over 12ch -----
    # Stage 1: fold the 4 kw2 taps into channels, slicing straight from the ref.
    xw = jnp.concatenate(
        [x_ref[0, :, kw2:kw2 + OW, :] for kw2 in range(4)], axis=-1)   # (Hs, OW, 48)
    # Stage 2: fold the 4 kh2 taps (cheap major-dim slices) into channels.
    lhs = jnp.concatenate(
        [xw[kh2:kh2 + OH] for kh2 in range(4)], axis=-1)               # (OH, OW, 192)
    lhs = lhs.reshape(OH * OW, lhs.shape[-1])

    # --- single MXU matmul with K=192, f32 accumulation ------------------------------
    acc = jnp.dot(lhs, w_ref[...], preferred_element_type=f32)         # (OH*OW, 64)
    y = acc.reshape(OH, OW, cout)

    # --- MaxPool rows (k=3, s=2, p=1): all ops along the un-tiled major dim ----------
    if OH % 2 == 1:                                  # pad rows so OH -> 2*PH
        y = jnp.concatenate([y, jnp.full((1, OW, cout), neg, f32)], axis=0)
    yr = y.reshape(PH, 2, OW, cout)                  # pure major-dim regroup
    r_mid, r_low = yr[:, 0], yr[:, 1]                # rows 2*ph, 2*ph+1
    rh = jnp.maximum(r_mid, r_low)
    if PH > 1:                                       # rows 2*ph-1 (previous pair's odd row)
        r_up = jnp.concatenate(
            [jnp.full((1, OW, cout), neg, f32), r_low[:-1]], axis=0)
        rh = jnp.maximum(rh, r_up)                   # (PH, OW, 64)

    # --- MaxPool cols fused with lane-dense packing ----------------------------------
    # Output column pw = max over ow in {2pw-1, 2pw, 2pw+1} (edges handled statically,
    # no pad slabs); each column is a (PH, 64) sublane slice, packed into lanes
    # [pw*64, (pw+1)*64) by a single 64-aligned lane concatenation.
    cols = []
    for pw in range(PW):
        c = rh[:, 2 * pw, :]
        if 2 * pw - 1 >= 0:
            c = jnp.maximum(c, rh[:, 2 * pw - 1, :])
        if 2 * pw + 1 < OW:
            c = jnp.maximum(c, rh[:, 2 * pw + 1, :])
        cols.append(c)
    pooled = jnp.concatenate(cols, axis=-1)          # (PH, PW*64), lane-dense

    # --- folded-BN bias + ReLU on the 4x smaller pooled slab; one dense store --------
    o_ref[0] = jnp.maximum(pooled + b_ref[...], 0.0).astype(o_ref.dtype)


# ----------------------------- wrapper ------------------------------------- #

def bottom_layer_forward(x_nchw, w_oihw, gamma, beta, running_mean, running_var,
                         eps=1e-5):
    N, Cin, H, W = x_nchw.shape
    Cout, _, KH, KW = w_oihw.shape                   # (64, 3, 7, 7)
    stride, pad = 2, 3
    OH = (H + 2 * pad - KH) // stride + 1
    OW = (W + 2 * pad - KW) // stride + 1
    PH = (OH + 2 - 3) // 2 + 1
    PW = (OW + 2 - 3) // 2 + 1

    # --- single cheap relayout of the input: bf16 cast + pad + 2x2 space-to-depth ----
    # (one fused XLA pass over bf16 bytes; no HBM im2col).
    Hp, Wp = H + 2 * pad, W + 2 * pad
    Hp_e, Wp_e = Hp + (Hp % 2), Wp + (Wp % 2)        # even, so rows/cols fold 2x2 cleanly
    Hs, Ws = Hp_e // 2, Wp_e // 2                    # == OH + 3, OW + 3
    x = x_nchw.astype(jnp.bfloat16)
    x = jnp.pad(x, ((0, 0), (0, 0), (pad, Hp_e - H - pad), (pad, Wp_e - W - pad)))
    x = x.reshape(N, Cin, Hs, 2, Ws, 2)
    xs = jnp.transpose(x, (0, 2, 4, 3, 5, 1)).reshape(N, Hs, Ws, 4 * Cin)
    # TODO(synk): accept NHWC/bf16 input (or fold this relayout into the kernel with
    #             strided ref slices) so HBM is read exactly once.

    # --- fold BN scale into the conv weights; flatten all taps to one K=192 matrix ---
    scale = gamma / jnp.sqrt(running_var + eps)                        # (Cout,)
    bias = beta - running_mean * scale                                 # (Cout,)
    bias_t = jnp.tile(bias, PW).reshape(1, PW * Cout).astype(jnp.float32)
    w = w_oihw.astype(jnp.float32) * scale[:, None, None, None]        # (Cout,Cin,7,7)
    w = jnp.pad(w, ((0, 0), (0, 0), (0, 1), (0, 1)))                   # taps -> 8x8 (zeros)
    w = w.reshape(Cout, Cin, 4, 2, 4, 2)                               # (co,ci,kh2,dh,kw2,dw)
    w192 = jnp.transpose(w, (2, 4, 3, 5, 1, 0)).reshape(16 * 4 * Cin, Cout)
    w192 = w192.astype(jnp.bfloat16)

    kernel = functools.partial(_stem_kernel, OH=OH, OW=OW, PH=PH, PW=PW)
    pooled = pl.pallas_call(
        kernel,
        out_shape=jax.ShapeDtypeStruct((N, PH, PW * Cout), jnp.float32),
        grid=(N,),
        in_specs=[
            pl.BlockSpec((1, Hs, Ws, 4 * Cin), lambda n: (n, 0, 0, 0)),
            pl.BlockSpec((16 * 4 * Cin, Cout), lambda n: (0, 0)),
            pl.BlockSpec((1, PW * Cout), lambda n: (0, 0)),
        ],
        out_specs=pl.BlockSpec((1, PH, PW * Cout), lambda n: (n, 0, 0)),
        compiler_params=pltpu.CompilerParams(
            # TODO(synk): use pltpu.CORE_PARALLEL on this axis for v7x (2 TCs/chip).
            dimension_semantics=("parallel",),
            # 32 MiB is safe on every generation at stem-sized blocks; raise toward
            # 64-96 MiB on v5e/v6e for very large images, or band over H on v7x.
            vmem_limit_bytes=32 * 1024 * 1024),
    )(xs, w192, bias_t)

    out = pooled.reshape(N, PH, PW, Cout)
    return jnp.transpose(out, (0, 3, 1, 2))          # back to NCHW


# ----------------------------- reference ------------------------------------ #

def reference(x_nchw, w_oihw, gamma, beta, running_mean, running_var, eps=1e-5):
    # Same dtype policy as the kernel (bf16 inputs, BN-scale-folded bf16 weights,
    # f32 accumulation) so the comparison below can be tight.
    scale = gamma / jnp.sqrt(running_var + eps)
    bias = beta - running_mean * scale
    x = jnp.transpose(x_nchw, (0, 2, 3, 1)).astype(jnp.bfloat16).astype(jnp.float32)
    w = (w_oihw.astype(jnp.float32) * scale[:, None, None, None]
         ).astype(jnp.bfloat16).astype(jnp.float32)
    w = jnp.transpose(w, (2, 3, 1, 0))               # HWIO
    y = lax.conv_general_dilated(
        x, w, window_strides=(2, 2), padding=((3, 3), (3, 3)),
        dimension_numbers=("NHWC", "HWIO", "NHWC"),
        precision=lax.Precision.HIGHEST)
    y = jnp.maximum(y + bias, 0.0)
    y = lax.reduce_window(y, -jnp.inf, lax.max,
                          window_dimensions=(1, 3, 3, 1),
                          window_strides=(1, 2, 2, 1),
                          padding=((0, 0), (1, 1), (1, 1), (0, 0)))
    return jnp.transpose(y, (0, 3, 1, 2))


# ------------------------------- main ---------------------------------------- #

if __name__ == "__main__":
    key = jax.random.PRNGKey(0)
    k_x, k_w, k_g, k_b, k_m, k_v = jax.random.split(key, 6)

    N, Cin, H, W = 2, 3, 16, 16
    Cout, KH, KW = 64, 7, 7

    x = jax.random.normal(k_x, (N, Cin, H, W), dtype=jnp.float32)
    conv_w = jax.random.normal(k_w, (Cout, Cin, KH, KW), dtype=jnp.float32) * 0.1
    gamma = 1.0 + 0.1 * jax.random.normal(k_g, (Cout,), dtype=jnp.float32)
    beta = 0.1 * jax.random.normal(k_b, (Cout,), dtype=jnp.float32)
    running_mean = 0.1 * jax.random.normal(k_m, (Cout,), dtype=jnp.float32)
    running_var = jax.random.uniform(k_v, (Cout,), minval=0.5, maxval=1.5,
                                     dtype=jnp.float32)

    fwd = jax.jit(bottom_layer_forward)
    out = jax.block_until_ready(fwd(x, conv_w, gamma, beta, running_mean, running_var))
    ref = jax.block_until_ready(
        reference(x, conv_w, gamma, beta, running_mean, running_var))

    assert out.shape == (N, Cout, 4, 4), out.shape
    err = float(jnp.max(jnp.abs(out - ref)))
    assert jnp.allclose(out, ref, atol=1e-2, rtol=1e-2), f"max abs err = {err}"

    print("KERNEL_OK")
</pallas_src>

<mosaic_0001>
module attributes {stable_mosaic.version = 11 : i64} {
  func.func @_stem_kernel(%arg0: i32, %arg1: memref<1x11x11x12xbf16, #tpu.memory_space<vmem>>, %arg2: memref<192x64xbf16, #tpu.memory_space<vmem>>, %arg3: memref<1x256xf32, #tpu.memory_space<vmem>>, %arg4: memref<1x4x256xf32, #tpu.memory_space<vmem>>) attributes {dimension_semantics = [#tpu.dimension_semantics<parallel>], iteration_bounds = array<i64: 2>, scalar_prefetch = 0 : i64, scratch_operands = 0 : i64, tpu.core_type = #tpu.core_type<tc>, window_params = [{transform_indices = @transform_0, window_bounds = array<i64: 1, 11, 11, 12>}, {pipeline_mode = #tpu.pipeline_mode<synchronous>, transform_indices = @transform_1, window_bounds = array<i64: 192, 64>}, {pipeline_mode = #tpu.pipeline_mode<synchronous>, transform_indices = @transform_2, window_bounds = array<i64: 1, 256>}, {transform_indices = @transform_3, window_bounds = array<i64: 1, 4, 256>}]} {
    %c0 = arith.constant 0 : index
    %c0_0 = arith.constant 0 : index
    %c0_1 = arith.constant 0 : index
    %c0_2 = arith.constant 0 : index
    %0 = vector.load %arg1[%c0, %c0_0, %c0_1, %c0_2] : memref<1x11x11x12xbf16, #tpu.memory_space<vmem>>, vector<1x11x8x12xbf16>
    %1 = vector.shape_cast %0 : vector<1x11x8x12xbf16> to vector<11x8x12xbf16>
    %c0_3 = arith.constant 0 : index
    %c0_4 = arith.constant 0 : index
    %c1 = arith.constant 1 : index
    %c0_5 = arith.constant 0 : index
    %2 = vector.load %arg1[%c0_3, %c0_4, %c1, %c0_5] : memref<1x11x11x12xbf16, #tpu.memory_space<vmem>>, vector<1x11x8x12xbf16>
    %3 = vector.shape_cast %2 : vector<1x11x8x12xbf16> to vector<11x8x12xbf16>
    %c0_6 = arith.constant 0 : index
    %c0_7 = arith.constant 0 : index
    %c2 = arith.constant 2 : index
    %c0_8 = arith.constant 0 : index
    %4 = vector.load %arg1[%c0_6, %c0_7, %c2, %c0_8] : memref<1x11x11x12xbf16, #tpu.memory_space<vmem>>, vector<1x11x8x12xbf16>
    %5 = vector.shape_cast %4 : vector<1x11x8x12xbf16> to vector<11x8x12xbf16>
    %c0_9 = arith.constant 0 : index
    %c0_10 = arith.constant 0 : index
    %c3 = arith.constant 3 : index
    %c0_11 = arith.constant 0 : index
    %6 = vector.load %arg1[%c0_9, %c0_10, %c3, %c0_11] : memref<1x11x11x12xbf16, #tpu.memory_space<vmem>>, vector<1x11x8x12xbf16>
    %7 = vector.shape_cast %6 : vector<1x11x8x12xbf16> to vector<11x8x12xbf16>
    %8 = tpu.concatenate %1, %3, %5, %7 in 2 : vector<11x8x12xbf16>, vector<11x8x12xbf16>, vector<11x8x12xbf16>, vector<11x8x12xbf16> -> vector<11x8x48xbf16>
    %9 = vector.extract_strided_slice %8 {offsets = [0, 0, 0], sizes = [8, 8, 48], strides = [1, 1, 1]} : vector<11x8x48xbf16> to vector<8x8x48xbf16>
    %10 = vector.extract_strided_slice %8 {offsets = [1, 0, 0], sizes = [8, 8, 48], strides = [1, 1, 1]} : vector<11x8x48xbf16> to vector<8x8x48xbf16>
    %11 = vector.extract_strided_slice %8 {offsets = [2, 0, 0], sizes = [8, 8, 48], strides = [1, 1, 1]} : vector<11x8x48xbf16> to vector<8x8x48xbf16>
    %12 = vector.extract_strided_slice %8 {offsets = [3, 0, 0], sizes = [8, 8, 48], strides = [1, 1, 1]} : vector<11x8x48xbf16> to vector<8x8x48xbf16>
    %13 = tpu.concatenate %9, %10, %11, %12 in 2 : vector<8x8x48xbf16>, vector<8x8x48xbf16>, vector<8x8x48xbf16>, vector<8x8x48xbf16> -> vector<8x8x192xbf16>
    %14 = vector.shape_cast %13 : vector<8x8x192xbf16> to vector<64x192xbf16>
    %c0_12 = arith.constant 0 : index
    %c0_13 = arith.constant 0 : index
    %15 = vector.load %arg2[%c0_12, %c0_13] : memref<192x64xbf16, #tpu.memory_space<vmem>>, vector<192x64xbf16>
    %cst = arith.constant dense<0.000000e+00> : vector<64x64xf32>
    %16 = tpu.matmul %14, %15, %cst {dimension_numbers = #tpu.dot_dimension_numbers<[1], [0], [0], [1], [0, 0, 1, 1], [], []>} : vector<64x192xbf16>, vector<192x64xbf16>, vector<64x64xf32> -> vector<64x64xf32>
    %17 = vector.shape_cast %16 : vector<64x64xf32> to vector<8x8x64xf32>
    %18 = vector.shape_cast %17 : vector<8x8x64xf32> to vector<4x2x8x64xf32>
    %19 = vector.extract_strided_slice %18 {offsets = [0, 0, 0, 0], sizes = [4, 1, 8, 64], strides = [1, 1, 1, 1]} : vector<4x2x8x64xf32> to vector<4x1x8x64xf32>
    %20 = vector.shape_cast %19 : vector<4x1x8x64xf32> to vector<4x8x64xf32>
    %21 = vector.extract_strided_slice %18 {offsets = [0, 1, 0, 0], sizes = [4, 1, 8, 64], strides = [1, 1, 1, 1]} : vector<4x2x8x64xf32> to vector<4x1x8x64xf32>
    %22 = vector.shape_cast %21 : vector<4x1x8x64xf32> to vector<4x8x64xf32>
    %23 = arith.maximumf %20, %22 : vector<4x8x64xf32>
    %cst_14 = arith.constant -3.40282347E+38 : f32
    %24 = vector.broadcast %cst_14 : f32 to vector<1x8x64xf32>
    %25 = vector.extract_strided_slice %22 {offsets = [0, 0, 0], sizes = [3, 8, 64], strides = [1, 1, 1]} : vector<4x8x64xf32> to vector<3x8x64xf32>
    %26 = tpu.concatenate %24, %25 in 0 : vector<1x8x64xf32>, vector<3x8x64xf32> -> vector<4x8x64xf32>
    %27 = arith.maximumf %23, %26 : vector<4x8x64xf32>
    %28 = vector.extract_strided_slice %27 {offsets = [0, 0, 0], sizes = [4, 1, 64], strides = [1, 1, 1]} : vector<4x8x64xf32> to vector<4x1x64xf32>
    %29 = vector.shape_cast %28 : vector<4x1x64xf32> to vector<4x64xf32>
    %30 = vector.extract_strided_slice %27 {offsets = [0, 1, 0], sizes = [4, 1, 64], strides = [1, 1, 1]} : vector<4x8x64xf32> to vector<4x1x64xf32>
    %31 = vector.shape_cast %30 : vector<4x1x64xf32> to vector<4x64xf32>
    %32 = arith.maximumf %29, %31 : vector<4x64xf32>
    %33 = vector.extract_strided_slice %27 {offsets = [0, 2, 0], sizes = [4, 1, 64], strides = [1, 1, 1]} : vector<4x8x64xf32> to vector<4x1x64xf32>
    %34 = vector.shape_cast %33 : vector<4x1x64xf32> to vector<4x64xf32>
    %35 = vector.extract_strided_slice %27 {offsets = [0, 1, 0], sizes = [4, 1, 64], strides = [1, 1, 1]} : vector<4x8x64xf32> to vector<4x1x64xf32>
    %36 = vector.shape_cast %35 : vector<4x1x64xf32> to vector<4x64xf32>
    %37 = arith.maximumf %34, %36 : vector<4x64xf32>
    %38 = vector.extract_strided_slice %27 {offsets = [0, 3, 0], sizes = [4, 1, 64], strides = [1, 1, 1]} : vector<4x8x64xf32> to vector<4x1x64xf32>
    %39 = vector.shape_cast %38 : vector<4x1x64xf32> to vector<4x64xf32>
    %40 = arith.maximumf %37, %39 : vector<4x64xf32>
    %41 = vector.extract_strided_slice %27 {offsets = [0, 4, 0], sizes = [4, 1, 64], strides = [1, 1, 1]} : vector<4x8x64xf32> to vector<4x1x64xf32>
    %42 = vector.shape_cast %41 : vector<4x1x64xf32> to vector<4x64xf32>
    %43 = vector.extract_strided_slice %27 {offsets = [0, 3, 0], sizes = [4, 1, 64], strides = [1, 1, 1]} : vector<4x8x64xf32> to vector<4x1x64xf32>
    %44 = vector.shape_cast %43 : vector<4x1x64xf32> to vector<4x64xf32>
    %45 = arith.maximumf %42, %44 : vector<4x64xf32>
    %46 = vector.extract_strided_slice %27 {offsets = [0, 5, 0], sizes = [4, 1, 64], strides = [1, 1, 1]} : vector<4x8x64xf32> to vector<4x1x64xf32>
    %47 = vector.shape_cast %46 : vector<4x1x64xf32> to vector<4x64xf32>
    %48 = arith.maximumf %45, %47 : vector<4x64xf32>
    %49 = vector.extract_strided_slice %27 {offsets = [0, 6, 0], sizes = [4, 1, 64], strides = [1, 1, 1]} : vector<4x8x64xf32> to vector<4x1x64xf32>
    %50 = vector.shape_cast %49 : vector<4x1x64xf32> to vector<4x64xf32>
    %51 = vector.extract_strided_slice %27 {offsets = [0, 5, 0], sizes = [4, 1, 64], strides = [1, 1, 1]} : vector<4x8x64xf32> to vector<4x1x64xf32>
    %52 = vector.shape_cast %51 : vector<4x1x64xf32> to vector<4x64xf32>
    %53 = arith.maximumf %50, %52 : vector<4x64xf32>
    %54 = vector.extract_strided_slice %27 {offsets = [0, 7, 0], sizes = [4, 1, 64], strides = [1, 1, 1]} : vector<4x8x64xf32> to vector<4x1x64xf32>
    %55 = vector.shape_cast %54 : vector<4x1x64xf32> to vector<4x64xf32>
    %56 = arith.maximumf %53, %55 : vector<4x64xf32>
    %57 = tpu.concatenate %32, %40, %48, %56 in 1 : vector<4x64xf32>, vector<4x64xf32>, vector<4x64xf32>, vector<4x64xf32> -> vector<4x256xf32>
    %c0_15 = arith.constant 0 : index
    %c0_16 = arith.constant 0 : index
    %58 = vector.load %arg3[%c0_15, %c0_16] : memref<1x256xf32, #tpu.memory_space<vmem>>, vector<1x256xf32>
    %59 = vector.broadcast %58 : vector<1x256xf32> to vector<4x256xf32>
    %60 = arith.addf %57, %59 : vector<4x256xf32>
    %cst_17 = arith.constant 0.000000e+00 : f32
    %61 = vector.broadcast %cst_17 : f32 to vector<4x256xf32>
    %62 = arith.maximumf %60, %61 : vector<4x256xf32>
    %c0_18 = arith.constant 0 : index
    %c0_19 = arith.constant 0 : index
    %c0_20 = arith.constant 0 : index
    %63 = vector.load %arg4[%c0_18, %c0_19, %c0_20] : memref<1x4x256xf32, #tpu.memory_space<vmem>>, vector<1x4x256xf32>
    %64 = vector.shape_cast %63 : vector<1x4x256xf32> to vector<4x256xf32>
    %65 = vector.shape_cast %62 : vector<4x256xf32> to vector<1x4x256xf32>
    tpu.vector_store %arg4[%c0_18, %c0_19, %c0_20], %65 {strides = array<i32>} : memref<1x4x256xf32, #tpu.memory_space<vmem>>, vector<1x4x256xf32>,
    return
  }
  func.func @transform_0(%arg0: i32) -> (i32, i32, i32, i32) {
    %c0_i32 = arith.constant 0 : i32
    %c0_i32_0 = arith.constant 0 : i32
    %c0_i32_1 = arith.constant 0 : i32
    %c0_i32_2 = arith.constant 0 : i32
    return %arg0, %c0_i32, %c0_i32_0, %c0_i32_1 : i32, i32, i32, i32
  }
  func.func @transform_1(%arg0: i32) -> (i32, i32) {
    %c0_i32 = arith.constant 0 : i32
    %c0_i32_0 = arith.constant 0 : i32
    %c0_i32_1 = arith.constant 0 : i32
    return %c0_i32, %c0_i32_0 : i32, i32
  }
  func.func @transform_2(%arg0: i32) -> (i32, i32) {
    %c0_i32 = arith.constant 0 : i32
    %c0_i32_0 = arith.constant 0 : i32
    %c0_i32_1 = arith.constant 0 : i32
    return %c0_i32, %c0_i32_0 : i32, i32
  }
  func.func @transform_3(%arg0: i32) -> (i32, i32, i32) {
    %c0_i32 = arith.constant 0 : i32
    %c0_i32_0 = arith.constant 0 : i32
    %c0_i32_1 = arith.constant 0 : i32
    return %arg0, %c0_i32, %c0_i32_0 : i32, i32, i32
  }
}

</mosaic_0001>

<llo_original>
// kernel: tile.8
$region0: #{tile.8}
  #allocation0 [shape = 's32[1]{0}', space=sflag, size = 0x4, scoped, tag = 'scoped memory for tile.8']
  %s0 = inlined_call_operand.vmem [shape: f32[64], index: 0, kind: input, shape index: {}]
  %s1 = inlined_call_operand.vmem [shape: f32[4,64], index: 1, kind: output, shape index: {}]
  // Predicated region
  $region2: #{tile.8} parent=0 // pred_check
    _
  $region3: #{tile.8} parent=0 // pred_check_branch
    %3 = sbr.rel (0) target = $region5
  $region4: #{tile.8} parent=0 // pred_region
    _
  $region5: #{tile.8} parent=0 // pred_fallthru
    _
  %v4 = vld [vmem:[%s0] ss:$0 sm:$0xff]
  %5 = vst [vmem:[%s1] sm:$0xf] %v4

// kernel: tile.9
$region0: #{tile.9}
  %s0 = inlined_call_operand.vmem [shape: f32[4,64], index: 0, kind: input, shape index: {}]
  %s1 = inlined_call_operand.vmem [shape: f32[1,256], index: 1, kind: output, shape index: {}]
  $region1: #{tile.9} parent=0
    #allocation0 [shape = 'u8[8192]{0}', space=vmem, size = 0x2000, scoped, tag = 'scoped mem for output reshape']
    #allocation1 [shape = 'u8[4096]{0}', space=vmem, size = 0x1000, scoped, tag = 'scoped mem for input reshape']
    %s3 = ssub.s32 16, 1
    %v4 = vld [vmem:[%s0] sm:%s3]
    %5 = vst [vmem:[#allocation1] sm:%s3] %v4
    %s6 = smov 3
    %v7 = vld [vmem:[#allocation1] ss:$2 sm:%s6]
    %vm8 = vcmask 523264
    %9 = vst.msk [vmem:[#allocation0] ss:$8 sm:$0x3] %vm8, %v7
    %s10 = scalar_lea.vmem [#allocation1], 1
    %s11 = smov 3
    %v12 = vld [vmem:[%s10] ss:$2 sm:%s11]
    %13 = vrot.lane.b32.xlu0 %v12, 64
    %v14 = vpop.permute.xlu0 %13
    %vm15 = vcmask 1048064
    %16 = vst.msk [vmem:[#allocation0] ss:$8 sm:$0x3] %vm15, %v14
    %s18 = ssub.s32 2, 1
    %v19 = vld [vmem:[#allocation0] sm:%s18]
    %s21 = ssub.s32 2, 1
    %22 = vst [vmem:[%s1] sm:%s21] %v19
    %s23 = scalar_lea.vmem [#allocation0], 8
    %v24 = vld [vmem:[%s23] sm:%s18]
    %s26 = ssub.s32 2, 1
    %s27 = scalar_lea.vmem %s1, 1
    %28 = vst [vmem:[%s27] sm:%s26] %v24

// kernel: bottom_layer_forward.1
$region0: #{bottom_layer_forward.1}
  #allocation0 [shape = 'u32[]', space=smem, size = 0x4, offset = 0x4, fixed_abs, tag = 'smem constant byte address 0x4 - core index']
  #allocation1 [shape = 'u32[72,128]{1,0:T(1,128)}', space=vmem, size = 0x9000, scoped, tag = 'internal scratch']
  %s0 = inlined_call_operand.vmem [shape: bf16[2,11,11,12], index: 0, kind: input, shape index: {}]
  %s1 = inlined_call_operand.vmem [shape: bf16[192,64], index: 1, kind: input, shape index: {}]
  %s2 = inlined_call_operand.vmem [shape: f32[1,256], index: 2, kind: input, shape index: {}]
  %s3 = inlined_call_operand.vmem [shape: f32[2,4,256], index: 3, kind: output, shape index: {}]
  %s4 = sld [smem:[#allocation0]]
  $region45: #{bottom_layer_forward.1} parent=0
    _
  %s6 = ssub.s32 1, %s4
  %s7 = scalar_select 0, %s6, %s4
  loop: start=0, step=1, limit=4
  $region2: #{bottom_layer_forward.1} parent=0 // loop_pre_header
    _
  $region3: #{bottom_layer_forward.1} parent=0 // loop_header
    %s9 = sphi 0, %s13
    %p10 = scmp.ge.s32.totalorder %s9, 4
    %s19 = sphi 0, %s21
    %s22 = sphi 0, %s19
    %s23 = sphi 0, %s22
    %s39 = sphi 0, %s23
    %s43 = sphi 0, %s43
    %s45 = sphi 0, %s43
    %s46 = sphi 0, %s45
    %s60 = sphi 0, %s46
    %s64 = sphi 0, %s64
    %s66 = sphi 0, %s64
    %s67 = sphi 0, %s66
    %s81 = sphi 0, %s67
    %s87 = sphi 0, %s89
    %s90 = sphi 0, %s87
    %s91 = sphi 0, %s90
    %s107 = sphi 0, %s91
  $region4: #{bottom_layer_forward.1} parent=0 // loop_header_branch
    %12 = sbr.rel (%p10) target = $region8
  $region5: #{bottom_layer_forward.1} parent=0 // loop_body
    %s14 = ssub.s32 %s9, 1
    %s15 = ssub.s32 %s9, 2
    %s16 = sadd.s32 %s9, 1
    %s17 = ssub.s32 %s9, %s16
    %p18 = scmp.eq.s32.totalorder %s17, 0
    %s20 = sadd.s32 %s19, 1
    %s21 = scalar_select %p18, %s19, %s20
    %p24 = pneg %p18
    %p25 = scmp.eq.s32.totalorder %s9, 1
    %p26 = por %p24, %p25
    %p27 = scmp.ne.s32.totalorder %s19, %s22
    %p28 = scmp.eq.s32.totalorder %s9, 0
    %p29 = por %p27, %p28
    %p30 = scmp.ne.s32.totalorder %s19, %s22
    %p31 = scmp.eq.s32.totalorder %s14, 1
    %p32 = por %p30, %p31
    %p33 = scmp.ne.s32.totalorder %s22, %s23
    %p34 = scmp.eq.s32.totalorder %s14, 0
    %p35 = por %p33, %p34
    %p36 = scmp.ne.s32.totalorder %s22, %s23
    %p37 = scmp.eq.s32.totalorder %s15, 1
    %p38 = por %p36, %p37
    %p40 = scmp.ne.s32.totalorder %s23, %s39
    %p41 = scmp.eq.s32.totalorder %s15, 0
    %p42 = por %p40, %p41
    %s44 = sadd.s32 %s43, 1
    %p47 = scmp.eq.s32.totalorder %s9, 1
    %p48 = scmp.ne.s32.totalorder %s43, %s45
    %p49 = scmp.eq.s32.totalorder %s9, 0
    %p50 = por %p48, %p49
    %p51 = scmp.ne.s32.totalorder %s43, %s45
    %p52 = scmp.eq.s32.totalorder %s14, 1
    %p53 = por %p51, %p52
    %p54 = scmp.ne.s32.totalorder %s45, %s46
    %p55 = scmp.eq.s32.totalorder %s14, 0
    %p56 = por %p54, %p55
    %p57 = scmp.ne.s32.totalorder %s45, %s46
    %p58 = scmp.eq.s32.totalorder %s15, 1
    %p59 = por %p57, %p58
    %p61 = scmp.ne.s32.totalorder %s46, %s60
    %p62 = scmp.eq.s32.totalorder %s15, 0
    %p63 = por %p61, %p62
    %s65 = sadd.s32 %s64, 1
    %p68 = scmp.eq.s32.totalorder %s9, 1
    %p69 = scmp.ne.s32.totalorder %s64, %s66
    %p70 = scmp.eq.s32.totalorder %s9, 0
    %p71 = por %p69, %p70
    %p72 = scmp.ne.s32.totalorder %s64, %s66
    %p73 = scmp.eq.s32.totalorder %s14, 1
    %p74 = por %p72, %p73
    %p75 = scmp.ne.s32.totalorder %s66, %s67
    %p76 = scmp.eq.s32.totalorder %s14, 0
    %p77 = por %p75, %p76
    %p78 = scmp.ne.s32.totalorder %s66, %s67
    %p79 = scmp.eq.s32.totalorder %s15, 1
    %p80 = por %p78, %p79
    %p82 = scmp.ne.s32.totalorder %s67, %s81
    %p83 = scmp.eq.s32.totalorder %s15, 0
    %p84 = por %p82, %p83
    %s85 = ssub.s32 %s9, %s16
    %p86 = scmp.eq.s32.totalorder %s85, 0
    %s88 = sadd.s32 %s87, 1
    %s89 = scalar_select %p86, %s87, %s88
    %p92 = pneg %p86
    %p93 = scmp.eq.s32.totalorder %s9, 1
    %p94 = por %p92, %p93
    %p95 = scmp.ne.s32.totalorder %s87, %s90
    %p96 = scmp.eq.s32.totalorder %s9, 0
    %p97 = por %p95, %p96
    %p98 = scmp.ne.s32.totalorder %s87, %s90
    %p99 = scmp.eq.s32.totalorder %s14, 1
    %p100 = por %p98, %p99
    %p101 = scmp.ne.s32.totalorder %s90, %s91
    %p102 = scmp.eq.s32.totalorder %s14, 0
    %p103 = por %p101, %p102
    %p104 = scmp.ne.s32.totalorder %s90, %s91
    %p105 = scmp.eq.s32.totalorder %s15, 1
    %p106 = por %p104, %p105
    %p108 = scmp.ne.s32.totalorder %s91, %s107
    %p109 = scmp.eq.s32.totalorder %s15, 0
    %p110 = por %p108, %p109
    %p111 = scmp.le.s32.totalorder 1, %s9
    %p112 = scmp.lt.s32.totalorder %s9, 3
    %p113 = pnand %p111, %p112
    %p114 = pneg %p113
    // Predicated region
    $region9: #{bottom_layer_forward.1} parent=5 // pred_check
      _
    $region10: #{bottom_layer_forward.1} parent=5 // pred_check_branch
      %116 = sbr.rel (%p113) target = $region12
    $region11: #{bottom_layer_forward.1} parent=5 // pred_region
      %s117 = ssub.s32 %s9, 1
      // Predicated region
      $region13: #{bottom_layer_forward.1} parent=11 // pred_check
        %p118 = pneg %p56
      $region14: #{bottom_layer_forward.1} parent=11 // pred_check_branch
        %120 = sbr.rel (%p118) target = $region16
      $region15: #{bottom_layer_forward.1} parent=11 // pred_region
        _
      $region16: #{bottom_layer_forward.1} parent=11 // pred_fallthru
        _
      // Predicated region
      $region17: #{bottom_layer_forward.1} parent=11 // pred_check
        %p121 = pneg %p77
      $region18: #{bottom_layer_forward.1} parent=11 // pred_check_branch
        %123 = sbr.rel (%p121) target = $region20
      $region19: #{bottom_layer_forward.1} parent=11 // pred_region
        _
      $region20: #{bottom_layer_forward.1} parent=11 // pred_fallthru
        _
    $region12: #{bottom_layer_forward.1} parent=5 // pred_fallthru
      _
    %p124 = scmp.lt.s32.totalorder %s9, 2
    // Predicated region
    $region21: #{bottom_layer_forward.1} parent=5 // pred_check
      %p125 = pneg %p124
    $region22: #{bottom_layer_forward.1} parent=5 // pred_check_branch
      %127 = sbr.rel (%p125) target = $region24
    $region23: #{bottom_layer_forward.1} parent=5 // pred_region
      // Predicated region
      $region25: #{bottom_layer_forward.1} parent=23 // pred_check
        %p128 = pneg %p29
      $region26: #{bottom_layer_forward.1} parent=23 // pred_check_branch
        %130 = sbr.rel (%p128) target = $region28
      $region27: #{bottom_layer_forward.1} parent=23 // pred_region
        %p131 = scmp.lt.s32.totalorder %s9, 1
        %s132 = scalar_select %p131, %s9, 1
        %s133 = smul.addr %s132, 22
        %s134 = smul.addr %s133, 4
        %s135 = scalar_lea.vmem %s0, %s134
      $region28: #{bottom_layer_forward.1} parent=23 // pred_fallthru
        _
    $region24: #{bottom_layer_forward.1} parent=5 // pred_fallthru
      _
    %p136 = scmp.le.s32.totalorder 1, %s9
    %p137 = scmp.lt.s32.totalorder %s9, 3
    %p138 = pnand %p136, %p137
    %p139 = pneg %p138
    // Predicated region
    $region29: #{bottom_layer_forward.1} parent=5 // pred_check
      _
    $region30: #{bottom_layer_forward.1} parent=5 // pred_check_branch
      %141 = sbr.rel (%p138) target = $region32
    $region31: #{bottom_layer_forward.1} parent=5 // pred_region
      %s142 = ssub.s32 %s9, 1
      %p143 = scmp.lt.s32.totalorder %s14, 1
      %s144 = scalar_select %p143, %s14, 1
      %s145 = smul.addr %s144, 22
      %s146 = smul.addr %s145, 4
      %s147 = scalar_lea.vmem %s0, %s146
      %p148 = pneg %p35
      %p149 = pneg %p32
      %p150 = pneg %p56
      %p151 = pneg %p53
      %p152 = pneg %p77
      %p153 = pneg %p74
      %p154 = pneg %p103
      %p155 = pneg %p100
      %p156 = scmp.lt.s32.totalorder %s14, 1
      %s157 = scalar_select %p156, %s14, 1
      %s158 = smul.addr %s157, 2
      %s159 = smul.addr %s158, 4
      %s160 = scalar_lea.vmem %s3, %s159
      %p161 = scmp.lt.s32.totalorder %s14, 1
      %s162 = scalar_select %p161, %s14, 1
      %s163 = smul.addr %s162, 22
      %s164 = smul.addr %s163, 4
      %s165 = scalar_lea.vmem %s0, %s164
      %p166 = scmp.lt.s32.totalorder %s14, 1
      %s167 = scalar_select %p166, %s14, 1
      %s168 = smul.addr %s167, 2
      %s169 = smul.addr %s168, 4
      %s170 = scalar_lea.vmem %s3, %s169
      %v172 = vld [vmem:[%s165] sm:$0xf]
      %v173 = vld [vmem:[%s165 + $0x8] sm:$0xf]
      %v174 = vld [vmem:[%s165 + $0x10] sm:$0xf]
      %v175 = vld [vmem:[%s165 + $0x18] sm:$0xf]
      %v176 = vld [vmem:[%s165 + $0x20] sm:$0xf]
      %v177 = vld [vmem:[%s165 + $0x28] sm:$0xf]
      %v178 = vld [vmem:[%s165 + $0x30] sm:$0xf]
      %v179 = vld [vmem:[%s165 + $0x38] sm:$0xf]
      %v180 = vld [vmem:[%s165 + $0x40] sm:$0xf]
      %v181 = vld [vmem:[%s165 + $0x48] sm:$0xf]
      %v182 = vld [vmem:[%s165 + $0x50] sm:$0xf]
      %v183 = vld [vmem:[%s165 + $0x4] sm:$0x1]
      %v184 = vld [vmem:[%s165 + $0xc] sm:$0x1]
      %v185 = vld [vmem:[%s165 + $0x14] sm:$0x1]
      %v186 = vld [vmem:[%s165 + $0x1c] sm:$0x1]
      %v187 = vld [vmem:[%s165 + $0x24] sm:$0x1]
      %v188 = vld [vmem:[%s165 + $0x2c] sm:$0x1]
      %v189 = vld [vmem:[%s165 + $0x34] sm:$0x1]
      %v190 = vld [vmem:[%s165 + $0x3c] sm:$0x1]
      %v191 = vld [vmem:[%s165 + $0x44] sm:$0x1]
      %v192 = vld [vmem:[%s165 + $0x4c] sm:$0x1]
      %v193 = vld [vmem:[%s165 + $0x54] sm:$0x1]
      %v194 = vld [vmem:[%s165] sm:$0xe]
      %v195 = vld [vmem:[%s165 + $0x8] sm:$0xe]
      %v196 = vld [vmem:[%s165 + $0x10] sm:$0xe]
      %v197 = vld [vmem:[%s165 + $0x18] sm:$0xe]
      %v198 = vld [vmem:[%s165 + $0x20] sm:$0xe]
      %v199 = vld [vmem:[%s165 + $0x28] sm:$0xe]
      %v200 = vld [vmem:[%s165 + $0x30] sm:$0xe]
      %v201 = vld [vmem:[%s165 + $0x38] sm:$0xe]
      %v202 = vld [vmem:[%s165 + $0x40] sm:$0xe]
      %v203 = vld [vmem:[%s165 + $0x48] sm:$0xe]
      %v204 = vld [vmem:[%s165 + $0x50] sm:$0xe]
      %v205 = vld [vmem:[%s165 + $0x4] sm:$0x3]
      %v206 = vld [vmem:[%s165 + $0xc] sm:$0x3]
      %v207 = vld [vmem:[%s165 + $0x14] sm:$0x3]
      %v208 = vld [vmem:[%s165 + $0x1c] sm:$0x3]
      %v209 = vld [vmem:[%s165 + $0x24] sm:$0x3]
      %v210 = vld [vmem:[%s165 + $0x2c] sm:$0x3]
      %v211 = vld [vmem:[%s165 + $0x34] sm:$0x3]
      %v212 = vld [vmem:[%s165 + $0x3c] sm:$0x3]
      %v213 = vld [vmem:[%s165 + $0x44] sm:$0x3]
      %v214 = vld [vmem:[%s165 + $0x4c] sm:$0x3]
      %v215 = vld [vmem:[%s165 + $0x54] sm:$0x3]
      %v238 = vunpack.c.l.b16 %v172
      %v239 = vunpack.c.l.b16 %v183
      %v240 = vunpack.c.l.b16 %v173
      %v241 = vunpack.c.l.b16 %v184
      %v242 = vunpack.c.l.b16 %v174
      %v243 = vunpack.c.l.b16 %v185
      %v244 = vunpack.c.l.b16 %v175
      %v245 = vunpack.c.l.b16 %v186
      %v246 = vunpack.c.l.b16 %v176
      %v247 = vunpack.c.l.b16 %v187
      %v248 = vunpack.c.l.b16 %v177
      %v249 = vunpack.c.l.b16 %v188
      %v250 = vunpack.c.l.b16 %v178
      %v251 = vunpack.c.l.b16 %v189
      %v252 = vunpack.c.l.b16 %v179
      %v253 = vunpack.c.l.b16 %v190
      %v254 = vunpack.c.l.b16 %v180
      %v255 = vunpack.c.l.b16 %v191
      %v256 = vunpack.c.l.b16 %v181
      %v257 = vunpack.c.l.b16 %v192
      %v258 = vunpack.c.l.b16 %v182
      %v259 = vunpack.c.l.b16 %v193
      %v260 = vpack.c.b16 %v239, %v238
      %v261 = vpack.c.b16 %v241, %v240
      %v262 = vpack.c.b16 %v243, %v242
      %v263 = vpack.c.b16 %v245, %v244
      %v264 = vpack.c.b16 %v247, %v246
      %v265 = vpack.c.b16 %v249, %v248
      %v266 = vpack.c.b16 %v251, %v250
      %v267 = vpack.c.b16 %v253, %v252
      %v268 = vpack.c.b16 %v255, %v254
      %v269 = vpack.c.b16 %v257, %v256
      %v270 = vpack.c.b16 %v259, %v258
      %v272 = vshrl.u32 %v260, 16
      %v274 = vshll.u32 %v260, 16
      %v276 = vrot.slane %v274, 1
      %v277 = vor.u32 %v272, %v276
      %v279 = vshrl.u32 %v261, 16
      %v281 = vshll.u32 %v261, 16
      %v283 = vrot.slane %v281, 1
      %v284 = vor.u32 %v279, %v283
      %v286 = vshrl.u32 %v262, 16
      %v288 = vshll.u32 %v262, 16
      %v290 = vrot.slane %v288, 1
      %v291 = vor.u32 %v286, %v290
      %v293 = vshrl.u32 %v263, 16
      %v295 = vshll.u32 %v263, 16
      %v297 = vrot.slane %v295, 1
      %v298 = vor.u32 %v293, %v297
      %v300 = vshrl.u32 %v264, 16
      %v302 = vshll.u32 %v264, 16
      %v304 = vrot.slane %v302, 1
      %v305 = vor.u32 %v300, %v304
      %v307 = vshrl.u32 %v265, 16
      %v309 = vshll.u32 %v265, 16
      %v311 = vrot.slane %v309, 1
      %v312 = vor.u32 %v307, %v311
      %v314 = vshrl.u32 %v266, 16
      %v316 = vshll.u32 %v266, 16
      %v318 = vrot.slane %v316, 1
      %v319 = vor.u32 %v314, %v318
      %v321 = vshrl.u32 %v267, 16
      %v323 = vshll.u32 %v267, 16
      %v325 = vrot.slane %v323, 1
      %v326 = vor.u32 %v321, %v325
      %v328 = vshrl.u32 %v268, 16
      %v330 = vshll.u32 %v268, 16
      %v332 = vrot.slane %v330, 1
      %v333 = vor.u32 %v328, %v332
      %v335 = vshrl.u32 %v269, 16
      %v337 = vshll.u32 %v269, 16
      %v339 = vrot.slane %v337, 1
      %v340 = vor.u32 %v335, %v339
      %v342 = vshrl.u32 %v270, 16
      %v344 = vshll.u32 %v270, 16
      %v346 = vrot.slane %v344, 1
      %v347 = vor.u32 %v342, %v346
      %348 = vrot.lane.b32.xlu0 %v277, 12
      %v349 = vpop.permute.xlu0 %348
      %350 = vrot.lane.b32.xlu0 %v284, 12
      %v351 = vpop.permute.xlu0 %350
      %352 = vrot.lane.b32.xlu0 %v291, 12
      %v353 = vpop.permute.xlu0 %352
      %354 = vrot.lane.b32.xlu0 %v298, 12
      %v355 = vpop.permute.xlu0 %354
      %356 = vrot.lane.b32.xlu0 %v305, 12
      %v357 = vpop.permute.xlu0 %356
      %358 = vrot.lane.b32.xlu0 %v312, 12
      %v359 = vpop.permute.xlu0 %358
      %360 = vrot.lane.b32.xlu0 %v319, 12
      %v361 = vpop.permute.xlu0 %360
      %362 = vrot.lane.b32.xlu0 %v326, 12
      %v363 = vpop.permute.xlu0 %362
      %364 = vrot.lane.b32.xlu0 %v333, 12
      %v365 = vpop.permute.xlu0 %364
      %366 = vrot.lane.b32.xlu0 %v340, 12
      %v367 = vpop.permute.xlu0 %366
      %368 = vrot.lane.b32.xlu0 %v347, 12
      %v369 = vpop.permute.xlu0 %368
      %v381 = vunpack.c.l.b16 %v194
      %v382 = vunpack.c.l.b16 %v195
      %v383 = vunpack.c.l.b16 %v196
      %v384 = vunpack.c.l.b16 %v197
      %v385 = vunpack.c.l.b16 %v198
      %v386 = vunpack.c.l.b16 %v199
      %v387 = vunpack.c.l.b16 %v200
      %v388 = vunpack.c.l.b16 %v201
      %v389 = vunpack.c.l.b16 %v202
      %v390 = vunpack.c.l.b16 %v203
      %v391 = vunpack.c.l.b16 %v204
      %v392 = vpack.c.b16 %v239, %v381
      %v393 = vpack.c.b16 %v241, %v382
      %v394 = vpack.c.b16 %v243, %v383
      %v395 = vpack.c.b16 %v245, %v384
      %v396 = vpack.c.b16 %v247, %v385
      %v397 = vpack.c.b16 %v249, %v386
      %v398 = vpack.c.b16 %v251, %v387
      %v399 = vpack.c.b16 %v253, %v388
      %v400 = vpack.c.b16 %v255, %v389
      %v401 = vpack.c.b16 %v257, %v390
      %v402 = vpack.c.b16 %v259, %v391
      %v403 = vrot.slane %v392, 1
      %v404 = vrot.slane %v393, 1
      %v405 = vrot.slane %v394, 1
      %v406 = vrot.slane %v395, 1
      %v407 = vrot.slane %v396, 1
      %v408 = vrot.slane %v397, 1
      %v409 = vrot.slane %v398, 1
      %v410 = vrot.slane %v399, 1
      %v411 = vrot.slane %v400, 1
      %v412 = vrot.slane %v401, 1
      %v413 = vrot.slane %v402, 1
      %414 = vrot.lane.b32.xlu0 %v403, 24
      %v415 = vpop.permute.xlu0 %414
      %416 = vrot.lane.b32.xlu0 %v404, 24
      %v417 = vpop.permute.xlu0 %416
      %418 = vrot.lane.b32.xlu0 %v405, 24
      %v419 = vpop.permute.xlu0 %418
      %420 = vrot.lane.b32.xlu0 %v406, 24
      %v421 = vpop.permute.xlu0 %420
      %422 = vrot.lane.b32.xlu0 %v407, 24
      %v423 = vpop.permute.xlu0 %422
      %424 = vrot.lane.b32.xlu0 %v408, 24
      %v425 = vpop.permute.xlu0 %424
      %426 = vrot.lane.b32.xlu0 %v409, 24
      %v427 = vpop.permute.xlu0 %426
      %428 = vrot.lane.b32.xlu0 %v410, 24
      %v429 = vpop.permute.xlu0 %428
      %430 = vrot.lane.b32.xlu0 %v411, 24
      %v431 = vpop.permute.xlu0 %430
      %432 = vrot.lane.b32.xlu0 %v412, 24
      %v433 = vpop.permute.xlu0 %432
      %434 = vrot.lane.b32.xlu0 %v413, 24
      %v435 = vpop.permute.xlu0 %434
      %v447 = vunpack.c.l.b16 %v205
      %v448 = vunpack.c.l.b16 %v206
      %v449 = vunpack.c.l.b16 %v207
      %v450 = vunpack.c.l.b16 %v208
      %v451 = vunpack.c.l.b16 %v209
      %v452 = vunpack.c.l.b16 %v210
      %v453 = vunpack.c.l.b16 %v211
      %v454 = vunpack.c.l.b16 %v212
      %v455 = vunpack.c.l.b16 %v213
      %v456 = vunpack.c.l.b16 %v214
      %v457 = vunpack.c.l.b16 %v215
      %v458 = vpack.c.b16 %v447, %v381
      %v459 = vpack.c.b16 %v448, %v382
      %v460 = vpack.c.b16 %v449, %v383
      %v461 = vpack.c.b16 %v450, %v384
      %v462 = vpack.c.b16 %v451, %v385
      %v463 = vpack.c.b16 %v452, %v386
      %v464 = vpack.c.b16 %v453, %v387
      %v465 = vpack.c.b16 %v454, %v388
      %v466 = vpack.c.b16 %v455, %v389
      %v467 = vpack.c.b16 %v456, %v390
      %v468 = vpack.c.b16 %v457, %v391
      %v470 = vshrl.u32 %v458, 16
      %v472 = vrot.slane %v470, 1
      %v473 = vshll.u32 %v458, 16
      %v475 = vrot.slane %v473, 2
      %v476 = vor.u32 %v472, %v475
      %v478 = vshrl.u32 %v459, 16
      %v480 = vrot.slane %v478, 1
      %v481 = vshll.u32 %v459, 16
      %v483 = vrot.slane %v481, 2
      %v484 = vor.u32 %v480, %v483
      %v486 = vshrl.u32 %v460, 16
      %v488 = vrot.slane %v486, 1
      %v489 = vshll.u32 %v460, 16
      %v491 = vrot.slane %v489, 2
      %v492 = vor.u32 %v488, %v491
      %v494 = vshrl.u32 %v461, 16
      %v496 = vrot.slane %v494, 1
      %v497 = vshll.u32 %v461, 16
      %v499 = vrot.slane %v497, 2
      %v500 = vor.u32 %v496, %v499
      %v502 = vshrl.u32 %v462, 16
      %v504 = vrot.slane %v502, 1
      %v505 = vshll.u32 %v462, 16
      %v507 = vrot.slane %v505, 2
      %v508 = vor.u32 %v504, %v507
      %v510 = vshrl.u32 %v463, 16
      %v512 = vrot.slane %v510, 1
      %v513 = vshll.u32 %v463, 16
      %v515 = vrot.slane %v513, 2
      %v516 = vor.u32 %v512, %v515
      %v518 = vshrl.u32 %v464, 16
      %v520 = vrot.slane %v518, 1
      %v521 = vshll.u32 %v464, 16
      %v523 = vrot.slane %v521, 2
      %v524 = vor.u32 %v520, %v523
      %v526 = vshrl.u32 %v465, 16
      %v528 = vrot.slane %v526, 1
      %v529 = vshll.u32 %v465, 16
      %v531 = vrot.slane %v529, 2
      %v532 = vor.u32 %v528, %v531
      %v534 = vshrl.u32 %v466, 16
      %v536 = vrot.slane %v534, 1
      %v537 = vshll.u32 %v466, 16
      %v539 = vrot.slane %v537, 2
      %v540 = vor.u32 %v536, %v539
      %v542 = vshrl.u32 %v467, 16
      %v544 = vrot.slane %v542, 1
      %v545 = vshll.u32 %v467, 16
      %v547 = vrot.slane %v545, 2
      %v548 = vor.u32 %v544, %v547
      %v550 = vshrl.u32 %v468, 16
      %v552 = vrot.slane %v550, 1
      %v553 = vshll.u32 %v468, 16
      %v555 = vrot.slane %v553, 2
      %v556 = vor.u32 %v552, %v555
      %557 = vrot.lane.b32.xlu0 %v476, 36
      %v558 = vpop.permute.xlu0 %557
      %559 = vrot.lane.b32.xlu0 %v484, 36
      %v560 = vpop.permute.xlu0 %559
      %561 = vrot.lane.b32.xlu0 %v492, 36
      %v562 = vpop.permute.xlu0 %561
      %563 = vrot.lane.b32.xlu0 %v500, 36
      %v564 = vpop.permute.xlu0 %563
      %565 = vrot.lane.b32.xlu0 %v508, 36
      %v566 = vpop.permute.xlu0 %565
      %567 = vrot.lane.b32.xlu0 %v516, 36
      %v568 = vpop.permute.xlu0 %567
      %569 = vrot.lane.b32.xlu0 %v524, 36
      %v570 = vpop.permute.xlu0 %569
      %571 = vrot.lane.b32.xlu0 %v532, 36
      %v572 = vpop.permute.xlu0 %571
      %573 = vrot.lane.b32.xlu0 %v540, 36
      %v574 = vpop.permute.xlu0 %573
      %575 = vrot.lane.b32.xlu0 %v548, 36
      %v576 = vpop.permute.xlu0 %575
      %577 = vrot.lane.b32.xlu0 %v556, 36
      %v578 = vpop.permute.xlu0 %577
      %vm579 = vcmask 97280
      %v582 = vsel %vm579, %v172, %v349
      %v585 = vsel %vm579, %v173, %v351
      %v588 = vsel %vm579, %v174, %v353
      %v591 = vsel %vm579, %v175, %v355
      %v594 = vsel %vm579, %v176, %v357
      %v597 = vsel %vm579, %v177, %v359
      %v600 = vsel %vm579, %v178, %v361
      %v603 = vsel %vm579, %v179, %v363
      %v606 = vsel %vm579, %v180, %v365
      %v609 = vsel %vm579, %v181, %v367
      %v612 = vsel %vm579, %v182, %v369
      %vm613 = vcmask 195584
      %v615 = vsel %vm613, %v582, %v415
      %v617 = vsel %vm613, %v585, %v417
      %v619 = vsel %vm613, %v588, %v419
      %v621 = vsel %vm613, %v591, %v421
      %v623 = vsel %vm613, %v594, %v423
      %v625 = vsel %vm613, %v597, %v425
      %v627 = vsel %vm613, %v600, %v427
      %v629 = vsel %vm613, %v603, %v429
      %v631 = vsel %vm613, %v606, %v431
      %v633 = vsel %vm613, %v609, %v433
      %v635 = vsel %vm613, %v612, %v435
      %vm636 = vcmask 293888
      %v638 = vsel %vm636, %v615, %v558
      %v640 = vsel %vm636, %v617, %v560
      %v642 = vsel %vm636, %v619, %v562
      %v644 = vsel %vm636, %v621, %v564
      %v646 = vsel %vm636, %v623, %v566
      %v648 = vsel %vm636, %v625, %v568
      %v650 = vsel %vm636, %v627, %v570
      %v652 = vsel %vm636, %v629, %v572
      %v654 = vsel %vm636, %v631, %v574
      %v656 = vsel %vm636, %v633, %v576
      %v658 = vsel %vm636, %v635, %v578
      %667 = vrot.lane.b32.xlu0 %v640, 48
      %v668 = vpop.permute.xlu0 %667
      %669 = vrot.lane.b32.xlu0 %v642, 48
      %v670 = vpop.permute.xlu0 %669
      %671 = vrot.lane.b32.xlu0 %v644, 48
      %v672 = vpop.permute.xlu0 %671
      %673 = vrot.lane.b32.xlu0 %v646, 48
      %v674 = vpop.permute.xlu0 %673
      %675 = vrot.lane.b32.xlu0 %v648, 48
      %v676 = vpop.permute.xlu0 %675
      %677 = vrot.lane.b32.xlu0 %v650, 48
      %v678 = vpop.permute.xlu0 %677
      %679 = vrot.lane.b32.xlu0 %v652, 48
      %v680 = vpop.permute.xlu0 %679
      %681 = vrot.lane.b32.xlu0 %v654, 48
      %v682 = vpop.permute.xlu0 %681
      %684 = vrot.lane.b32.xlu0 %v642, 96
      %v685 = vpop.permute.xlu0 %684
      %686 = vrot.lane.b32.xlu0 %v644, 96
      %v687 = vpop.permute.xlu0 %686
      %688 = vrot.lane.b32.xlu0 %v646, 96
      %v689 = vpop.permute.xlu0 %688
      %690 = vrot.lane.b32.xlu0 %v648, 96
      %v691 = vpop.permute.xlu0 %690
      %692 = vrot.lane.b32.xlu0 %v650, 96
      %v693 = vpop.permute.xlu0 %692
      %694 = vrot.lane.b32.xlu0 %v652, 96
      %v695 = vpop.permute.xlu0 %694
      %696 = vrot.lane.b32.xlu0 %v654, 96
      %v697 = vpop.permute.xlu0 %696
      %698 = vrot.lane.b32.xlu0 %v656, 96
      %v699 = vpop.permute.xlu0 %698
      %701 = vrot.lane.b32.xlu0 %v644, 16
      %v702 = vpop.permute.xlu0 %701
      %703 = vrot.lane.b32.xlu0 %v646, 16
      %v704 = vpop.permute.xlu0 %703
      %705 = vrot.lane.b32.xlu0 %v648, 16
      %v706 = vpop.permute.xlu0 %705
      %707 = vrot.lane.b32.xlu0 %v650, 16
      %v708 = vpop.permute.xlu0 %707
      %709 = vrot.lane.b32.xlu0 %v652, 16
      %v710 = vpop.permute.xlu0 %709
      %711 = vrot.lane.b32.xlu0 %v654, 16
      %v712 = vpop.permute.xlu0 %711
      %713 = vrot.lane.b32.xlu0 %v656, 16
      %v714 = vpop.permute.xlu0 %713
      %715 = vrot.lane.b32.xlu0 %v658, 16
      %v716 = vpop.permute.xlu0 %715
      %vm717 = vcmask 392192
      %v719 = vsel %vm717, %v638, %v668
      %v721 = vsel %vm717, %v640, %v670
      %v723 = vsel %vm717, %v642, %v672
      %v725 = vsel %vm717, %v644, %v674
      %v727 = vsel %vm717, %v646, %v676
      %v729 = vsel %vm717, %v648, %v678
      %v731 = vsel %vm717, %v650, %v680
      %v733 = vsel %vm717, %v652, %v682
      %vm734 = vcmask 785408
      %v736 = vsel %vm734, %v719, %v685
      %v738 = vsel %vm734, %v721, %v687
      %v740 = vsel %vm734, %v723, %v689
      %v742 = vsel %vm734, %v725, %v691
      %v744 = vsel %vm734, %v727, %v693
      %v746 = vsel %vm734, %v729, %v695
      %v748 = vsel %vm734, %v731, %v697
      %v750 = vsel %vm734, %v733, %v699
      %vm751 = vcmask 130048
      %v753 = vsel %vm751, %v685, %v702
      %v755 = vsel %vm751, %v687, %v704
      %v757 = vsel %vm751, %v689, %v706
      %v759 = vsel %vm751, %v691, %v708
      %v761 = vsel %vm751, %v693, %v710
      %v763 = vsel %vm751, %v695, %v712
      %v765 = vsel %vm751, %v697, %v714
      %v767 = vsel %vm751, %v699, %v716
      %v784 = vunpack.c.l.b16 %v736
      %v785 = vunpack.c.l.b16 %v753
      %v786 = vunpack.c.l.b16 %v738
      %v787 = vunpack.c.l.b16 %v755
      %v788 = vunpack.c.l.b16 %v740
      %v789 = vunpack.c.l.b16 %v757
      %v790 = vunpack.c.l.b16 %v742
      %v791 = vunpack.c.l.b16 %v759
      %v792 = vunpack.c.l.b16 %v744
      %v793 = vunpack.c.l.b16 %v761
      %v794 = vunpack.c.l.b16 %v746
      %v795 = vunpack.c.l.b16 %v763
      %v796 = vunpack.c.l.b16 %v748
      %v797 = vunpack.c.l.b16 %v765
      %v798 = vunpack.c.l.b16 %v750
      %v799 = vunpack.c.l.b16 %v767
      %v800 = vld [vmem:[%s1] sm:$0xf]
      %v801 = vld [vmem:[%s1 + $0x4] sm:$0xf]
      %v802 = vld [vmem:[%s1 + $0x8] sm:$0xf]
      %v803 = vld [vmem:[%s1 + $0xc] sm:$0xf]
      %v804 = vld [vmem:[%s1 + $0x10] sm:$0xf]
      %v805 = vld [vmem:[%s1 + $0x14] sm:$0xf]
      %v806 = vld [vmem:[%s1 + $0x18] sm:$0xf]
      %v807 = vld [vmem:[%s1 + $0x1c] sm:$0xf]
      %v808 = vld [vmem:[%s1 + $0x20] sm:$0xf]
      %v809 = vld [vmem:[%s1 + $0x24] sm:$0xf]
      %v810 = vld [vmem:[%s1 + $0x28] sm:$0xf]
      %v811 = vld [vmem:[%s1 + $0x2c] sm:$0xf]
      %v812 = vld [vmem:[%s1 + $0x30] sm:$0xf]
      %v813 = vld [vmem:[%s1 + $0x34] sm:$0xf]
      %v814 = vld [vmem:[%s1 + $0x38] sm:$0xf]
      %v815 = vld [vmem:[%s1 + $0x3c] sm:$0xf]
      %v816 = vld [vmem:[%s1 + $0x40] sm:$0xf]
      %v817 = vld [vmem:[%s1 + $0x44] sm:$0xf]
      %v818 = vld [vmem:[%s1 + $0x48] sm:$0xf]
      %v819 = vld [vmem:[%s1 + $0x4c] sm:$0xf]
      %v820 = vld [vmem:[%s1 + $0x50] sm:$0xf]
      %v821 = vld [vmem:[%s1 + $0x54] sm:$0xf]
      %v822 = vld [vmem:[%s1 + $0x58] sm:$0xf]
      %v823 = vld [vmem:[%s1 + $0x5c] sm:$0xf]
      %v824 = vpack.c.b16 %v786, %v784
      %v825 = vpack.c.b16 %v787, %v785
      %v826 = vpack.c.b16 %v790, %v788
      %v827 = vpack.c.b16 %v791, %v789
      %v828 = vpack.c.b16 %v794, %v792
      %v829 = vpack.c.b16 %v795, %v793
      %v830 = vpack.c.b16 %v798, %v796
      %v831 = vpack.c.b16 %v799, %v797
      %v860 = vunpack.c.l.b16 %v800
      %v861 = vunpack.c.l.b16 %v801
      %v862 = vunpack.c.l.b16 %v802
      %v863 = vunpack.c.l.b16 %v803
      %v864 = vunpack.c.l.b16 %v804
      %v865 = vunpack.c.l.b16 %v805
      %v866 = vunpack.c.l.b16 %v806
      %v867 = vunpack.c.l.b16 %v807
      %v868 = vunpack.c.l.b16 %v808
      %v869 = vunpack.c.l.b16 %v809
      %v870 = vunpack.c.l.b16 %v810
      %v871 = vunpack.c.l.b16 %v811
      %v872 = vunpack.c.l.b16 %v812
      %v873 = vunpack.c.l.b16 %v813
      %v874 = vunpack.c.l.b16 %v814
      %v875 = vunpack.c.l.b16 %v815
      %v876 = vunpack.c.l.b16 %v816
      %v877 = vunpack.c.l.b16 %v817
      %v878 = vunpack.c.l.b16 %v818
      %v879 = vunpack.c.l.b16 %v819
      %v880 = vunpack.c.l.b16 %v820
      %v881 = vunpack.c.l.b16 %v821
      %v882 = vunpack.c.l.b16 %v822
      %v883 = vunpack.c.l.b16 %v823
      %v884 = vpack.c.b16 %v861, %v860
      %v885 = vpack.c.b16 %v863, %v862
      %v886 = vpack.c.b16 %v865, %v864
      %v887 = vpack.c.b16 %v867, %v866
      %v888 = vpack.c.b16 %v869, %v868
      %v889 = vpack.c.b16 %v871, %v870
      %v890 = vpack.c.b16 %v873, %v872
      %v891 = vpack.c.b16 %v875, %v874
      %v892 = vpack.c.b16 %v877, %v876
      %v893 = vpack.c.b16 %v879, %v878
      %v894 = vpack.c.b16 %v881, %v880
      %v895 = vpack.c.b16 %v883, %v882
      %vm908 = vcmask 523264
      %v910 = vsel %vm908, %v825, 0
      %v913 = vsel %vm908, %v827, 0
      %v916 = vsel %vm908, %v829, 0
      %v919 = vsel %vm908, %v831, 0
      %921 = vmatpush.bf16.msra.mxu0 %v891
      %922 = vmatpush.bf16.msra.mxu0 %v890
      %923 = vmatpush.bf16.msra.mxu0 %v889
      %924 = vmatpush.bf16.msra.mxu0 %v888
      %925 = vmatpush.bf16.msra.mxu0 %v887
      %926 = vmatpush.bf16.msra.mxu0 %v886
      %927 = vmatpush.bf16.msra.mxu0 %v885
      %928 = vmatpush.bf16.msra.mxu0 %v884
      %929 = vmatmul.bf16.gmra.mxu0 %v824
      %v930 = vpop.f32.mrf.mxu0
      %v931 = vadd.f32 0.0, %v930
      %v932 = vpop.f32.mrf.mxu0
      %v933 = vadd.f32 0.0, %v932
      %934 = vmatmul.bf16.gmra.mxu0 %v826
      %v935 = vpop.f32.mrf.mxu0
      %v936 = vadd.f32 0.0, %v935
      %v937 = vpop.f32.mrf.mxu0
      %v938 = vadd.f32 0.0, %v937
      %939 = vmatmul.bf16.gmra.mxu0 %v828
      %v940 = vpop.f32.mrf.mxu0
      %v941 = vadd.f32 0.0, %v940
      %v942 = vpop.f32.mrf.mxu0
      %v943 = vadd.f32 0.0, %v942
      %944 = vmatmul.bf16.gmra.mxu0 %v830
      %v945 = vpop.f32.mrf.mxu0
      %v946 = vadd.f32 0.0, %v945
      %v947 = vpop.f32.mrf.mxu0
      %v948 = vadd.f32 0.0, %v947
      %949 = vdwg.mxu0
      %950 = vmatpush.bf16.msra.mxu0 0
      %951 = vmatpush.bf16.msra.mxu0 0
      %952 = vmatpush.bf16.msra.mxu0 0
      %953 = vmatpush.bf16.msra.mxu0 0
      %954 = vmatpush.bf16.msra.mxu0 %v895
      %955 = vmatpush.bf16.msra.mxu0 %v894
      %956 = vmatpush.bf16.msra.mxu0 %v893
      %957 = vmatpush.bf16.msra.mxu0 %v892
      %958 = vmatmul.bf16.gmra.mxu0 %v910
      %v959 = vpop.f32.mrf.mxu0
      %v960 = vadd.f32 %v931, %v959
      %v961 = vpop.f32.mrf.mxu0
      %v962 = vadd.f32 %v933, %v961
      %963 = vmatmul.bf16.gmra.mxu0 %v913
      %v964 = vpop.f32.mrf.mxu0
      %v965 = vadd.f32 %v936, %v964
      %v966 = vpop.f32.mrf.mxu0
      %v967 = vadd.f32 %v938, %v966
      %968 = vmatmul.bf16.gmra.mxu0 %v916
      %v969 = vpop.f32.mrf.mxu0
      %v970 = vadd.f32 %v941, %v969
      %v971 = vpop.f32.mrf.mxu0
      %v972 = vadd.f32 %v943, %v971
      %973 = vmatmul.bf16.gmra.mxu0 %v919
      %v974 = vpop.f32.mrf.mxu0
      %v975 = vadd.f32 %v946, %v974
      %v976 = vpop.f32.mrf.mxu0
      %v977 = vadd.f32 %v948, %v976
      %978 = vdwg.mxu0
      %v979 = vmax.f32 %v960, %v962
      %v980 = vmax.f32 %v965, %v967
      %v981 = vmax.f32 %v970, %v972
      %v982 = vmax.f32 %v975, %v977
      %v983 = vmax.f32 %v979, -3.4028235e+38
      %v984 = vmax.f32 %v980, %v962
      %v985 = vmax.f32 %v981, %v967
      %v986 = vmax.f32 %v982, %v972
      %v991 = vrot.slane %v983, 1
      %v992 = vrot.slane %v984, 1
      %v993 = vrot.slane %v985, 1
      %v994 = vrot.slane %v986, 1
      %v999 = vmax.f32 %v983, %v991
      %v1000 = vmax.f32 %v984, %v992
      %v1001 = vmax.f32 %v985, %v993
      %v1002 = vmax.f32 %v986, %v994
      %v1003 = vrot.slane %v983, 7
      %v1004 = vrot.slane %v984, 7
      %v1005 = vrot.slane %v985, 7
      %v1006 = vrot.slane %v986, 7
      %v1011 = vmax.f32 %v983, %v1003
      %v1012 = vmax.f32 %v984, %v1004
      %v1013 = vmax.f32 %v985, %v1005
      %v1014 = vmax.f32 %v986, %v1006
      %v1015 = vmax.f32 %v1011, %v991
      %v1016 = vmax.f32 %v1012, %v992
      %v1017 = vmax.f32 %v1013, %v993
      %v1018 = vmax.f32 %v1014, %v994
      %v1023 = vrot.slane %v1000, 7
      %vm1024 = vcmask 1041409
      %v1025 = vsel %vm1024, %v1023, %v999
      %v1026 = vrot.slane %v1001, 6
      %vm1027 = vcmask 1042434
      %v1028 = vsel %vm1027, %v1026, %v1025
      %v1029 = vrot.slane %v1002, 5
      %vm1030 = vcmask 1043459
      %v1031 = vsel %vm1030, %v1029, %v1028
      %v1037 = vrot.slane %v1015, 2
      %v1038 = vrot.slane %v1016, 1
      %v1039 = vsel %vm1024, %v1038, %v1037
      %v1040 = vsel %vm1027, %v1017, %v1039
      %v1041 = vrot.slane %v1018, 7
      %v1042 = vsel %vm1030, %v1041, %v1040
      %1043 = vrot.lane.b32.xlu0 %v1042, 64
      %v1044 = vpop.permute.xlu0 %1043
      %v1046 = vrot.slane %v1015, 4
      %v1047 = vrot.slane %v1016, 3
      %v1048 = vsel %vm1024, %v1047, %v1046
      %v1049 = vrot.slane %v1017, 2
      %v1050 = vsel %vm1027, %v1049, %v1048
      %v1051 = vrot.slane %v1018, 1
      %v1052 = vsel %vm1030, %v1051, %v1050
      %v1054 = vrot.slane %v1015, 6
      %v1055 = vrot.slane %v1016, 5
      %v1056 = vsel %vm1024, %v1055, %v1054
      %v1057 = vrot.slane %v1017, 4
      %v1058 = vsel %vm1027, %v1057, %v1056
      %v1059 = vrot.slane %v1018, 3
      %v1060 = vsel %vm1030, %v1059, %v1058
      %1061 = vrot.lane.b32.xlu0 %v1060, 64
      %v1062 = vpop.permute.xlu0 %1061
      %v1064 = vsel %vm908, %v1031, %v1044
      %v1065 = vsel %vm908, %v1052, %v1062
      %v1066 = vld [vmem:[%s2] sm:$0x3]
      %v1068 = vperm.slane %v1066, 0
      %v1069 = vperm.slane %v1066, 1
      %v1072 = vadd.f32 %v1064, %v1068
      %v1073 = vadd.f32 %v1065, %v1069
      %v1074 = vmax.f32 %v1072, 0.0
      %v1075 = vmax.f32 %v1073, 0.0
      %v1078 = vrot.slane %v1075, 4
      %vm1079 = vcmask 1043456
      %v1080 = vsel %vm1079, %v1074, %v1078
      %1082 = vst [vmem:[%s170] sm:$0xff] %v1080
      %p1083 = scmp.lt.s32.totalorder %s14, 1
      %s1084 = scalar_select %p1083, %s14, 1
      %s1085 = smul.addr %s1084, 2
      %s1086 = smul.addr %s1085, 4
      %s1087 = scalar_lea.vmem %s3, %s1086
      // Predicated region
      $region33: #{bottom_layer_forward.1} parent=31 // pred_check
        %p1088 = pneg %p100
      $region34: #{bottom_layer_forward.1} parent=31 // pred_check_branch
        %1090 = sbr.rel (%p1088) target = $region36
      $region35: #{bottom_layer_forward.1} parent=31 // pred_region
        _
      $region36: #{bottom_layer_forward.1} parent=31 // pred_fallthru
        _
    $region32: #{bottom_layer_forward.1} parent=5 // pred_fallthru
      _
    %p1091 = scmp.le.s32.totalorder 2, %s9
    // Predicated region
    $region37: #{bottom_layer_forward.1} parent=5 // pred_check
      %p1092 = pneg %p1091
    $region38: #{bottom_layer_forward.1} parent=5 // pred_check_branch
      %1094 = sbr.rel (%p1092) target = $region40
    $region39: #{bottom_layer_forward.1} parent=5 // pred_region
      %s1095 = ssub.s32 %s9, 2
      // Predicated region
      $region41: #{bottom_layer_forward.1} parent=39 // pred_check
        %p1096 = pneg %p106
      $region42: #{bottom_layer_forward.1} parent=39 // pred_check_branch
        %1098 = sbr.rel (%p1096) target = $region44
      $region43: #{bottom_layer_forward.1} parent=39 // pred_region
        %p1099 = scmp.lt.s32.totalorder %s15, 1
        %s1100 = scalar_select %p1099, %s15, 1
        %s1101 = smul.addr %s1100, 2
        %s1102 = smul.addr %s1101, 4
        %s1103 = scalar_lea.vmem %s3, %s1102
      $region44: #{bottom_layer_forward.1} parent=39 // pred_fallthru
        _
    $region40: #{bottom_layer_forward.1} parent=5 // pred_fallthru
      _
  $region6: #{bottom_layer_forward.1} parent=0 // loop_footer
    %s13 = sadd.s32 1, %s9
  $region7: #{bottom_layer_forward.1} parent=0 // loop_footer_branch
    %8 = sbr.rel target = $region3
  $region8: #{bottom_layer_forward.1} parent=0 // loop_exit
    _

</llo_original>
